<compile_context>
chip_gen: v5e
topology: v5e:2x2
jax: 0.10.0
libtpu: 0.0.40
codegen_flags: <defaults>
</compile_context>

<pallas_src>
import functools

import jax
import jax.numpy as jnp
import numpy as np
from jax.experimental import pallas as pl
from jax.experimental.pallas import tpu as pltpu


def _sdpa_kernel(q_ref, k_ref, v_ref, mask_ref, rel_k_ref, o_ref, *, scale):
    """One grid step = (batch block, query tile)."""
    q = q_ref[...]                               # (bb, tq, Dp)  bf16
    if scale:
        # Scale the small (bb,tq,Dp) tile instead of the (bb,tq,L) logits.
        q = q * jnp.asarray(scale, dtype=q.dtype)
    k = k_ref[...]                               # (bb, L,  Dp)  bf16
    v = v_ref[...]                               # (bb, L,  Dp)  bf16
    rk = rel_k_ref[...]                          # (bb, 2,  L)   f32, pre-scaled

    # Single QK^T on the MXU (bf16 operands, f32 accumulation); shared by both
    # the adjacency and community paths via the rank-1 fold.
    att = jnp.einsum('bqd,bkd->bqk', q, k,
                     preferred_element_type=jnp.float32)       # (bb, tq, L)

    # Unpack the two binary masks from the single uint8 stream.
    packed = mask_ref[...].astype(jnp.int32)                   # (bb, tq, L)
    adj_m = (packed & 1).astype(jnp.float32)
    com_m = (packed >> 1).astype(jnp.float32)

    def masked_softmax(logits, m):
        row_max = jnp.max(logits, axis=-1, keepdims=True)
        e = jnp.exp(logits - row_max)
        s = jnp.sum(e, axis=-1, keepdims=True)
        return (e * pl.reciprocal(s, approx=True)) * m         # EUP reciprocal

    # Sequential accumulation -> at most ~3 (bb,tq,L) f32 tensors live at once.
    acc = masked_softmax(att + rk[:, 0:1, :], adj_m)
    acc = acc + masked_softmax(att + rk[:, 1:2, :], com_m)

    ctx = jnp.einsum('bqk,bkd->bqd', acc.astype(v.dtype), v,
                     preferred_element_type=jnp.float32)       # (bb, tq, Dp)
    o_ref[...] = ctx.astype(o_ref.dtype)


def _vmem_budget_bytes():
    """~75% of physical VMEM: ~48 MiB on v7x, ~96 MiB on v5e/v6e."""
    try:
        cap = int(pltpu.get_tpu_info().vmem_capacity_bytes)
    except Exception:
        cap = 64 * 2**20          # conservative default (v7x-sized)
    return (cap * 3) // 4


def _per_step_vmem_bytes(bb, tq, L, Dp, io_itemsize, out_itemsize):
    blocks = (bb * tq * Dp * io_itemsize          # Q tile
              + 2 * bb * L * Dp * io_itemsize     # K, V (full key length)
              + bb * tq * L * 1                   # packed uint8 mask tile
              + bb * 2 * L * 4                    # rel @ K^T rows (f32)
              + bb * tq * Dp * out_itemsize)      # output tile
    intermediates = 3 * bb * tq * L * 4 + bb * tq * Dp * 4     # att / p / acc + ctx
    return 2 * blocks + intermediates             # BlockSpec double-buffering


def _choose_block_sizes(B, L, Dp, io_itemsize, out_itemsize, budget):
    # Query tile: prefer 256 (matches the 256-tall MXU on v6e/v7x, and a multiple
    # of 32 so uint8 mask tiles aren't sublane-padded); a full-extent block is
    # always legal for small L.
    if L <= 256:
        tq = L
    else:
        tq = L
        for cand in (256, 128, 64, 32, 16, 8):
            if L % cand == 0:
                tq = cand
                break

    # Batch block: amortize per-step overhead when query tiles are small.  Both
    # grid axes are "parallel", so no need to reserve >=2 steps on the batch axis.
    bb = 1
    if tq < 128:
        target = max(1, 256 // max(tq, 1))
        for cand in range(min(target, B), 0, -1):
            if B % cand == 0:
                bb = cand
                break

    # Shrink until the per-step footprint fits the VMEM budget.
    def fits(bb_, tq_):
        return _per_step_vmem_bytes(bb_, tq_, L, Dp, io_itemsize,
                                    out_itemsize) <= budget

    while not fits(bb, tq):
        if bb > 1:
            bb = max(d for d in range(1, bb) if B % d == 0)
        elif tq > 8 and tq % 2 == 0 and L % (tq // 2) == 0:
            tq //= 2
        else:
            # TODO(synk): fall back to a flash-style key-axis grid here.
            break
    return bb, tq


def scaled_dot_product_attention(Q, K, V, adj_mask_matrix, com_mask_matrix,
                                 lattice_rel, scale=None):
    """Pallas equivalent of Scaled_Dot_Product_Attention.forward."""
    B, L, D = Q.shape
    orig_dtype = Q.dtype

    # bf16 MXU operands (f32 accumulation happens inside the kernel).
    compute_dtype = (jnp.bfloat16
                     if jnp.dtype(orig_dtype) == jnp.dtype(jnp.float32)
                     else orig_dtype)

    # Pad the head dim to a multiple of 128 for lane-dense loads/matmuls/stores.
    Dp = ((D + 127) // 128) * 128
    pad = Dp - D

    def prep(x):
        x = x.astype(compute_dtype)
        if pad:
            x = jnp.pad(x, ((0, 0), (0, 0), (0, pad)))
        return x

    Qc, Kc, Vc = prep(Q), prep(K), prep(V)

    # Relation vectors -> (2, Dp).  The Q.r and r.r terms are constant along each
    # softmax row and cancel, so only r @ K^T is needed (tiny, computed once).
    rel = jnp.stack([jnp.asarray(lattice_rel[0]).reshape(D),
                     jnp.asarray(lattice_rel[1]).reshape(D)]).astype(compute_dtype)
    if pad:
        rel = jnp.pad(rel, ((0, 0), (0, pad)))
    rel_k = jnp.einsum('rd,bld->brl', rel, Kc,
                       preferred_element_type=jnp.float32)     # (B, 2, L)
    if scale:   # matches the module's `if scale:` (falsy scale => no scaling)
        rel_k = rel_k * scale

    # Pack both binary masks into a single uint8 stream (bit0=adj, bit1=com).
    # TODO(synk): exact only for {0,1} masks; weighted masks would need a
    # separate (bf16) path.
    adj_bits = (adj_mask_matrix != 0).astype(jnp.uint8)
    com_bits = (com_mask_matrix != 0).astype(jnp.uint8)
    packed_mask = adj_bits | (com_bits << 1)                   # (B, L, L) uint8

    io_itemsize = jnp.dtype(compute_dtype).itemsize
    out_itemsize = jnp.dtype(orig_dtype).itemsize
    budget = _vmem_budget_bytes()
    bb, tq = _choose_block_sizes(B, L, Dp, io_itemsize, out_itemsize, budget)
    grid = (B // bb, L // tq)

    est = _per_step_vmem_bytes(bb, tq, L, Dp, io_itemsize, out_itemsize)
    vmem_limit = int(min(budget, max(16 * 2**20, 2 * est)))

    kernel = functools.partial(_sdpa_kernel, scale=scale)

    out = pl.pallas_call(
        kernel,
        out_shape=jax.ShapeDtypeStruct((B, L, Dp), orig_dtype),
        grid_spec=pltpu.PrefetchScalarGridSpec(
            num_scalar_prefetch=0,
            grid=grid,
            in_specs=[
                pl.BlockSpec((bb, tq, Dp), lambda b, q: (b, q, 0)),  # Q tile
                pl.BlockSpec((bb, L, Dp), lambda b, q: (b, 0, 0)),   # K (full keys)
                pl.BlockSpec((bb, L, Dp), lambda b, q: (b, 0, 0)),   # V (full keys)
                pl.BlockSpec((bb, tq, L), lambda b, q: (b, q, 0)),   # packed masks
                pl.BlockSpec((bb, 2, L), lambda b, q: (b, 0, 0)),    # rel @ K^T
            ],
            out_specs=pl.BlockSpec((bb, tq, Dp), lambda b, q: (b, q, 0)),
        ),
        compiler_params=pltpu.CompilerParams(
            dimension_semantics=("parallel", "parallel"),
            vmem_limit_bytes=vmem_limit),
    )(Qc, Kc, Vc, packed_mask, rel_k)

    if pad:
        out = out[..., :D]
    return out


def _reference(Q, K, V, adj_mask, com_mask, lattice_rel, scale=None):
    """Pure-JAX reference mirroring the PyTorch forward semantics (f32)."""
    adj_rel = jnp.asarray(lattice_rel[0]).reshape(1, 1, -1)
    com_rel = jnp.asarray(lattice_rel[1]).reshape(1, 1, -1)
    adj_q, adj_k = Q + adj_rel, K + adj_rel
    com_q, com_k = Q + com_rel, K + com_rel
    att_adj = jnp.einsum('bld,bmd->blm', adj_q, adj_k)
    att_com = jnp.einsum('bld,bmd->blm', com_q, com_k)
    if scale:
        att_adj = att_adj * scale
        att_com = att_com * scale
    m1 = jax.nn.softmax(att_adj, axis=-1) * adj_mask
    m2 = jax.nn.softmax(att_com, axis=-1) * com_mask
    return jnp.einsum('blm,bmd->bld', m1 + m2, V)


if __name__ == "__main__":
    B, L, D = 2, 8, 32
    key = jax.random.PRNGKey(0)
    kq, kk, kv, kma, kmc, kr1, kr2 = jax.random.split(key, 7)

    Q = jax.random.normal(kq, (B, L, D), dtype=jnp.float32)
    K = jax.random.normal(kk, (B, L, D), dtype=jnp.float32)
    V = jax.random.normal(kv, (B, L, D), dtype=jnp.float32)

    # Binary mask matrices [B, L, L]
    adj_mask = (jax.random.uniform(kma, (B, L, L)) > 0.5).astype(jnp.float32)
    com_mask = (jax.random.uniform(kmc, (B, L, L)) > 0.5).astype(jnp.float32)

    # lattice_rel: two relation embeddings of shape [1, 1, D] (as in the torch code)
    lattice_rel = [
        np.asarray(jax.random.normal(kr1, (1, 1, D), dtype=jnp.float32)),
        np.asarray(jax.random.normal(kr2, (1, 1, D), dtype=jnp.float32)),
    ]

    scale = 1.0 / float(np.sqrt(D))

    out = scaled_dot_product_attention(Q, K, V, adj_mask, com_mask,
                                       lattice_rel, scale=scale)
    out = jax.block_until_ready(out)

    ref = _reference(Q, K, V, adj_mask, com_mask, lattice_rel, scale=scale)
    # Tolerance covers bf16 MXU operands + approx reciprocal in the softmax denom.
    np.testing.assert_allclose(np.asarray(out), np.asarray(ref),
                               rtol=3e-2, atol=3e-2)

    print("KERNEL_OK")
</pallas_src>

<mosaic_0001>
module attributes {stable_mosaic.version = 11 : i64} {
  func.func @_sdpa_kernel(%arg0: i32, %arg1: i32, %arg2: memref<2x8x128xbf16, #tpu.memory_space<vmem>>, %arg3: memref<2x8x128xbf16, #tpu.memory_space<vmem>>, %arg4: memref<2x8x128xbf16, #tpu.memory_space<vmem>>, %arg5: memref<2x8x8xi8, #tpu.memory_space<vmem>>, %arg6: memref<2x2x8xf32, #tpu.memory_space<vmem>>, %arg7: memref<2x8x128xf32, #tpu.memory_space<vmem>>) attributes {dimension_semantics = [#tpu.dimension_semantics<parallel>, #tpu.dimension_semantics<parallel>], iteration_bounds = array<i64: 1, 1>, scalar_prefetch = 0 : i64, scratch_operands = 0 : i64, tpu.core_type = #tpu.core_type<tc>, window_params = [{transform_indices = @transform_0, window_bounds = array<i64: 2, 8, 128>}, {transform_indices = @transform_1, window_bounds = array<i64: 2, 8, 128>}, {transform_indices = @transform_2, window_bounds = array<i64: 2, 8, 128>}, {transform_indices = @transform_3, window_bounds = array<i64: 2, 8, 8>}, {transform_indices = @transform_4, window_bounds = array<i64: 2, 2, 8>}, {transform_indices = @transform_5, window_bounds = array<i64: 2, 8, 128>}]} {
    %c0 = arith.constant 0 : index
    %c0_0 = arith.constant 0 : index
    %c0_1 = arith.constant 0 : index
    %0 = vector.load %arg2[%c0, %c0_0, %c0_1] : memref<2x8x128xbf16, #tpu.memory_space<vmem>>, vector<2x8x128xbf16>
    %cst = arith.constant 1.767580e-01 : bf16
    %1 = vector.broadcast %cst : bf16 to vector<2x8x128xbf16>
    %2 = arith.mulf %0, %1 : vector<2x8x128xbf16>
    %c0_2 = arith.constant 0 : index
    %c0_3 = arith.constant 0 : index
    %c0_4 = arith.constant 0 : index
    %3 = vector.load %arg3[%c0_2, %c0_3, %c0_4] : memref<2x8x128xbf16, #tpu.memory_space<vmem>>, vector<2x8x128xbf16>
    %c0_5 = arith.constant 0 : index
    %c0_6 = arith.constant 0 : index
    %c0_7 = arith.constant 0 : index
    %4 = vector.load %arg4[%c0_5, %c0_6, %c0_7] : memref<2x8x128xbf16, #tpu.memory_space<vmem>>, vector<2x8x128xbf16>
    %c0_8 = arith.constant 0 : index
    %c0_9 = arith.constant 0 : index
    %c0_10 = arith.constant 0 : index
    %5 = vector.load %arg6[%c0_8, %c0_9, %c0_10] : memref<2x2x8xf32, #tpu.memory_space<vmem>>, vector<2x2x8xf32>
    "tpu.trace_start"() <{level = 10 : i32, message = "bqd,bkd->bqk"}> : () -> ()
    %cst_11 = arith.constant dense<0.000000e+00> : vector<2x8x8xf32>
    %6 = tpu.matmul %2, %3, %cst_11 {dimension_numbers = #tpu.dot_dimension_numbers<[2], [2], [1], [1], [0, 0, 0, 1, 1, 1], [0], [0]>} : vector<2x8x128xbf16>, vector<2x8x128xbf16>, vector<2x8x8xf32> -> vector<2x8x8xf32>
    "tpu.trace_stop"() : () -> ()
    %c0_12 = arith.constant 0 : index
    %c0_13 = arith.constant 0 : index
    %c0_14 = arith.constant 0 : index
    %7 = vector.load %arg5[%c0_12, %c0_13, %c0_14] : memref<2x8x8xi8, #tpu.memory_space<vmem>>, vector<2x8x8xi8>
    %8 = arith.extui %7 : vector<2x8x8xi8> to vector<2x8x8xi32>
    %c1_i32 = arith.constant 1 : i32
    %9 = vector.broadcast %c1_i32 : i32 to vector<2x8x8xi32>
    %10 = arith.andi %8, %9 : vector<2x8x8xi32>
    %11 = arith.sitofp %10 : vector<2x8x8xi32> to vector<2x8x8xf32>
    %c1_i32_15 = arith.constant 1 : i32
    %12 = vector.broadcast %c1_i32_15 : i32 to vector<2x8x8xi32>
    %13 = arith.shrsi %8, %12 : vector<2x8x8xi32>
    %14 = arith.sitofp %13 : vector<2x8x8xi32> to vector<2x8x8xf32>
    %15 = vector.extract_strided_slice %5 {offsets = [0, 0, 0], sizes = [2, 1, 8], strides = [1, 1, 1]} : vector<2x2x8xf32> to vector<2x1x8xf32>
    %16 = vector.broadcast %15 : vector<2x1x8xf32> to vector<2x8x8xf32>
    %17 = arith.addf %6, %16 : vector<2x8x8xf32>
    %cst_16 = arith.constant dense<0xFF800000> : vector<2x8xf32>
    %18 = vector.multi_reduction <maximumf>, %17, %cst_16 [2] : vector<2x8x8xf32> to vector<2x8xf32>
    %19 = vector.shape_cast %18 : vector<2x8xf32> to vector<2x8x1xf32>
    %20 = vector.broadcast %19 : vector<2x8x1xf32> to vector<2x8x8xf32>
    %21 = arith.subf %17, %20 : vector<2x8x8xf32>
    %22 = math.exp %21 : vector<2x8x8xf32>
    %cst_17 = arith.constant dense<0.000000e+00> : vector<2x8xf32>
    %23 = vector.multi_reduction <add>, %22, %cst_17 [2] : vector<2x8x8xf32> to vector<2x8xf32>
    %24 = vector.shape_cast %23 : vector<2x8xf32> to vector<2x8x1xf32>
    %25 = tpu.reciprocal %24 {approx = true} : vector<2x8x1xf32> -> vector<2x8x1xf32>
    %26 = vector.broadcast %25 : vector<2x8x1xf32> to vector<2x8x8xf32>
    %27 = arith.mulf %22, %26 : vector<2x8x8xf32>
    %28 = arith.mulf %27, %11 : vector<2x8x8xf32>
    %29 = vector.extract_strided_slice %5 {offsets = [0, 1, 0], sizes = [2, 1, 8], strides = [1, 1, 1]} : vector<2x2x8xf32> to vector<2x1x8xf32>
    %30 = vector.broadcast %29 : vector<2x1x8xf32> to vector<2x8x8xf32>
    %31 = arith.addf %6, %30 : vector<2x8x8xf32>
    %cst_18 = arith.constant dense<0xFF800000> : vector<2x8xf32>
    %32 = vector.multi_reduction <maximumf>, %31, %cst_18 [2] : vector<2x8x8xf32> to vector<2x8xf32>
    %33 = vector.shape_cast %32 : vector<2x8xf32> to vector<2x8x1xf32>
    %34 = vector.broadcast %33 : vector<2x8x1xf32> to vector<2x8x8xf32>
    %35 = arith.subf %31, %34 : vector<2x8x8xf32>
    %36 = math.exp %35 : vector<2x8x8xf32>
    %cst_19 = arith.constant dense<0.000000e+00> : vector<2x8xf32>
    %37 = vector.multi_reduction <add>, %36, %cst_19 [2] : vector<2x8x8xf32> to vector<2x8xf32>
    %38 = vector.shape_cast %37 : vector<2x8xf32> to vector<2x8x1xf32>
    %39 = tpu.reciprocal %38 {approx = true} : vector<2x8x1xf32> -> vector<2x8x1xf32>
    %40 = vector.broadcast %39 : vector<2x8x1xf32> to vector<2x8x8xf32>
    %41 = arith.mulf %36, %40 : vector<2x8x8xf32>
    %42 = arith.mulf %41, %14 : vector<2x8x8xf32>
    %43 = arith.addf %28, %42 : vector<2x8x8xf32>
    %44 = arith.truncf %43 : vector<2x8x8xf32> to vector<2x8x8xbf16>
    "tpu.trace_start"() <{level = 10 : i32, message = "bqk,bkd->bqd"}> : () -> ()
    %cst_20 = arith.constant dense<0.000000e+00> : vector<2x8x128xf32>
    %45 = tpu.matmul %44, %4, %cst_20 {dimension_numbers = #tpu.dot_dimension_numbers<[2], [1], [1], [2], [0, 0, 0, 1, 1, 2], [0], [0]>} : vector<2x8x8xbf16>, vector<2x8x128xbf16>, vector<2x8x128xf32> -> vector<2x8x128xf32>
    "tpu.trace_stop"() : () -> ()
    %c0_21 = arith.constant 0 : index
    %c0_22 = arith.constant 0 : index
    %c0_23 = arith.constant 0 : index
    %46 = vector.load %arg7[%c0_21, %c0_22, %c0_23] : memref<2x8x128xf32, #tpu.memory_space<vmem>>, vector<2x8x128xf32>
    tpu.vector_store %arg7[%c0_21, %c0_22, %c0_23], %45 {strides = array<i32>} : memref<2x8x128xf32, #tpu.memory_space<vmem>>, vector<2x8x128xf32>,
    return
  }
  func.func @transform_0(%arg0: i32, %arg1: i32) -> (i32, i32, i32) {
    %c0_i32 = arith.constant 0 : i32
    %c0_i32_0 = arith.constant 0 : i32
    return %arg0, %arg1, %c0_i32 : i32, i32, i32
  }
  func.func @transform_1(%arg0: i32, %arg1: i32) -> (i32, i32, i32) {
    %c0_i32 = arith.constant 0 : i32
    %c0_i32_0 = arith.constant 0 : i32
    %c0_i32_1 = arith.constant 0 : i32
    return %arg0, %c0_i32, %c0_i32_0 : i32, i32, i32
  }
  func.func @transform_2(%arg0: i32, %arg1: i32) -> (i32, i32, i32) {
    %c0_i32 = arith.constant 0 : i32
    %c0_i32_0 = arith.constant 0 : i32
    %c0_i32_1 = arith.constant 0 : i32
    return %arg0, %c0_i32, %c0_i32_0 : i32, i32, i32
  }
  func.func @transform_3(%arg0: i32, %arg1: i32) -> (i32, i32, i32) {
    %c0_i32 = arith.constant 0 : i32
    %c0_i32_0 = arith.constant 0 : i32
    return %arg0, %arg1, %c0_i32 : i32, i32, i32
  }
  func.func @transform_4(%arg0: i32, %arg1: i32) -> (i32, i32, i32) {
    %c0_i32 = arith.constant 0 : i32
    %c0_i32_0 = arith.constant 0 : i32
    %c0_i32_1 = arith.constant 0 : i32
    return %arg0, %c0_i32, %c0_i32_0 : i32, i32, i32
  }
  func.func @transform_5(%arg0: i32, %arg1: i32) -> (i32, i32, i32) {
    %c0_i32 = arith.constant 0 : i32
    %c0_i32_0 = arith.constant 0 : i32
    return %arg0, %arg1, %c0_i32 : i32, i32, i32
  }
}

</mosaic_0001>

<llo_original>
// kernel: tpu_custom_call.1
$region0: #{tpu_custom_call.1}
  #allocation0 [shape = 'u32[]', space=smem, size = 0x4, offset = 0x4, fixed_abs, tag = 'smem constant byte address 0x4 - core index']
  #allocation1 [shape = 'u32[72,128]{1,0:T(1,128)}', space=vmem, size = 0x9000, scoped, tag = 'internal scratch']
  %s0 = inlined_call_operand.hbm [shape: bf16[2,8,128], index: 0, kind: input, shape index: {}]
  %s1 = inlined_call_operand.hbm [shape: bf16[2,8,128], index: 1, kind: input, shape index: {}]
  %s2 = inlined_call_operand.hbm [shape: bf16[2,8,128], index: 2, kind: input, shape index: {}]
  %s3 = inlined_call_operand.hbm [shape: u8[2,8,8], index: 3, kind: input, shape index: {}]
  %s4 = inlined_call_operand.hbm [shape: f32[2,2,8], index: 4, kind: input, shape index: {}]
  %s5 = inlined_call_operand.hbm [shape: f32[2,8,128], index: 5, kind: output, shape index: {}]
  %s6 = sld [smem:[#allocation0]]
  $region50: #{tpu_custom_call.1} parent=0
    _
  %s8 = ssub.s32 1, %s6
  %s9 = scalar_select 0, %s8, %s6
  $region1: #{tpu_custom_call.1} parent=0
    #allocation2 [shape = 'u8[4096]{0}', space=vmem, size = 0x1000, scoped, tag = 'input window, operand 0, single buffered']
    #allocation3 [shape = 's32[1]{0}', space=sflag, size = 0x4, scoped, tag = 'scoped memory for tpu_custom_call.1']
    #allocation4 [shape = 's32[1]{0}', space=sflag, size = 0x4, scoped, tag = 'scoped memory for tpu_custom_call.1']
    #allocation5 [shape = 'u8[4096]{0}', space=vmem, size = 0x1000, scoped, tag = 'input window, operand 1, single buffered']
    #allocation6 [shape = 's32[1]{0}', space=sflag, size = 0x4, scoped, tag = 'scoped memory for tpu_custom_call.1']
    #allocation7 [shape = 'u8[4096]{0}', space=vmem, size = 0x1000, scoped, tag = 'input window, operand 2, single buffered']
    #allocation8 [shape = 'u8[2048]{0}', space=vmem, size = 0x800, scoped, tag = 'input window, operand 3, single buffered']
    #allocation9 [shape = 's32[1]{0}', space=sflag, size = 0x4, scoped, tag = 'scoped memory for tpu_custom_call.1']
    #allocation10 [shape = 'u8[2048]{0}', space=vmem, size = 0x800, scoped, tag = 'input window, operand 4, single buffered']
    #allocation11 [shape = 'u8[8192]{0}', space=vmem, size = 0x2000, scoped, tag = 'output window, operand 0, single buffered']
    %10 = vsyncpa [#allocation3], 0
    %11 = vsyncpa [#allocation6], 0
    %12 = vsyncpa [#allocation9], 0
    %13 = vsyncpa [#allocation4], 0
    // Predicated region
    $region2: #{tpu_custom_call.1} parent=1 // pred_check
      _
    $region3: #{tpu_custom_call.1} parent=1 // pred_check_branch
      %15 = sbr.rel (0) target = $region5
    $region4: #{tpu_custom_call.1} parent=1 // pred_region
      %17 = vsyncadd [#allocation3], 0
      %s18 = sshll.u32 %s0, 4
      %s19 = int_to_ptr.hbm [resolvable:$true] %s18
      %s20 = sshll.u32 [#allocation2], 4
      %s21 = int_to_ptr.vmem [resolvable:$true] %s20
      %26 = dma.hbm_to_vmem [thread:$0]  %s19, 128, %s21, [#allocation3], 64, 64, 4
    $region5: #{tpu_custom_call.1} parent=1 // pred_fallthru
      _
    // Predicated region
    $region6: #{tpu_custom_call.1} parent=1 // pred_check
      _
    $region7: #{tpu_custom_call.1} parent=1 // pred_check_branch
      %28 = sbr.rel (0) target = $region9
    $region8: #{tpu_custom_call.1} parent=1 // pred_region
      %30 = vsyncadd [#allocation6], 0
      %s31 = sshll.u32 %s1, 4
      %s32 = int_to_ptr.hbm [resolvable:$true] %s31
      %s33 = sshll.u32 [#allocation5], 4
      %s34 = int_to_ptr.vmem [resolvable:$true] %s33
      %39 = dma.hbm_to_vmem [thread:$0]  %s32, 128, %s34, [#allocation6], 64, 64, 4
    $region9: #{tpu_custom_call.1} parent=1 // pred_fallthru
      _
    // Predicated region
    $region10: #{tpu_custom_call.1} parent=1 // pred_check
      _
    $region11: #{tpu_custom_call.1} parent=1 // pred_check_branch
      %41 = sbr.rel (0) target = $region13
    $region12: #{tpu_custom_call.1} parent=1 // pred_region
      %43 = vsyncadd [#allocation6], 0
      %s44 = sshll.u32 %s2, 4
      %s45 = int_to_ptr.hbm [resolvable:$true] %s44
      %s46 = sshll.u32 [#allocation7], 4
      %s47 = int_to_ptr.vmem [resolvable:$true] %s46
      %52 = dma.hbm_to_vmem [thread:$0]  %s45, 128, %s47, [#allocation6], 64, 64, 4
    $region13: #{tpu_custom_call.1} parent=1 // pred_fallthru
      _
    // Predicated region
    $region14: #{tpu_custom_call.1} parent=1 // pred_check
      _
    $region15: #{tpu_custom_call.1} parent=1 // pred_check_branch
      %54 = sbr.rel (0) target = $region17
    $region16: #{tpu_custom_call.1} parent=1 // pred_region
      %56 = vsyncadd [#allocation9], 0
      %s57 = sshll.u32 %s3, 4
      %s58 = int_to_ptr.hbm [resolvable:$true] %s57
      %s59 = sshll.u32 [#allocation8], 4
      %s60 = int_to_ptr.vmem [resolvable:$true] %s59
      %65 = dma.hbm_to_vmem [thread:$0]  %s58, 64, %s60, [#allocation9], 32, 32, 2
    $region17: #{tpu_custom_call.1} parent=1 // pred_fallthru
      _
    // Predicated region
    $region18: #{tpu_custom_call.1} parent=1 // pred_check
      _
    $region19: #{tpu_custom_call.1} parent=1 // pred_check_branch
      %67 = sbr.rel (0) target = $region21
    $region20: #{tpu_custom_call.1} parent=1 // pred_region
      %69 = vsyncadd [#allocation9], 0
      %s70 = sshll.u32 %s4, 4
      %s71 = int_to_ptr.hbm [resolvable:$true] %s70
      %s72 = sshll.u32 [#allocation10], 4
      %s73 = int_to_ptr.vmem [resolvable:$true] %s72
      %78 = dma.hbm_to_vmem [thread:$0]  %s71, 64, %s73, [#allocation9], 32, 32, 2
    $region21: #{tpu_custom_call.1} parent=1 // pred_fallthru
      _
    // Predicated region
    $region22: #{tpu_custom_call.1} parent=1 // pred_check
      _
    $region23: #{tpu_custom_call.1} parent=1 // pred_check_branch
      %80 = sbr.rel (0) target = $region25
    $region24: #{tpu_custom_call.1} parent=1 // pred_region
      %82 = dma.done [#allocation3], 128
    $region25: #{tpu_custom_call.1} parent=1 // pred_fallthru
      _
    // Predicated region
    $region26: #{tpu_custom_call.1} parent=1 // pred_check
      _
    $region27: #{tpu_custom_call.1} parent=1 // pred_check_branch
      %84 = sbr.rel (0) target = $region29
    $region28: #{tpu_custom_call.1} parent=1 // pred_region
      %86 = dma.done [#allocation6], 128
    $region29: #{tpu_custom_call.1} parent=1 // pred_fallthru
      _
    // Predicated region
    $region30: #{tpu_custom_call.1} parent=1 // pred_check
      _
    $region31: #{tpu_custom_call.1} parent=1 // pred_check_branch
      %88 = sbr.rel (0) target = $region33
    $region32: #{tpu_custom_call.1} parent=1 // pred_region
      %90 = dma.done [#allocation6], 128
    $region33: #{tpu_custom_call.1} parent=1 // pred_fallthru
      _
    // Predicated region
    $region34: #{tpu_custom_call.1} parent=1 // pred_check
      _
    $region35: #{tpu_custom_call.1} parent=1 // pred_check_branch
      %92 = sbr.rel (0) target = $region37
    $region36: #{tpu_custom_call.1} parent=1 // pred_region
      %94 = dma.done [#allocation9], 64
    $region37: #{tpu_custom_call.1} parent=1 // pred_fallthru
      _
    // Predicated region
    $region38: #{tpu_custom_call.1} parent=1 // pred_check
      _
    $region39: #{tpu_custom_call.1} parent=1 // pred_check_branch
      %96 = sbr.rel (0) target = $region41
    $region40: #{tpu_custom_call.1} parent=1 // pred_region
      %98 = dma.done [#allocation9], 64
    $region41: #{tpu_custom_call.1} parent=1 // pred_fallthru
      _
    %v100 = vld [vmem:[#allocation2] sm:$0xf]
    %v101 = vld [vmem:[#allocation2 + $0x4] sm:$0xf]
    %v102 = vunpack.c.l.bf16 %v100
    %v103 = vunpack.c.l.bf16 %v101
    %v104 = vmul.f32 %v102, 0.17675781
    %v105 = vmul.f32 %v103, 0.17675781
    %v106 = vpack.c.bf16 %v104, %v104
    %v107 = vpack.c.bf16 %v105, %v105
    %v108 = vld [vmem:[#allocation5] sm:$0xf]
    %v109 = vld [vmem:[#allocation5 + $0x4] sm:$0xf]
    %v110 = vld [vmem:[#allocation7] sm:$0xf]
    %v111 = vld [vmem:[#allocation7 + $0x4] sm:$0xf]
    %v112 = vld [vmem:[#allocation10] sm:$0x3]
    %v113 = vld [vmem:[#allocation10 + $0x2] sm:$0x3]
    %114 = vmatpush.bf16.xpose.msra.mxu0 0
    %115 = vmatpush.bf16.xpose.msra.mxu0 0
    %116 = vmatpush.bf16.xpose.msra.mxu0 0
    %117 = vmatpush.bf16.xpose.msra.mxu0 0
    %118 = vmatpush.bf16.xpose.msra.mxu0 0
    %119 = vmatpush.bf16.xpose.msra.mxu0 0
    %120 = vmatpush.bf16.xpose.msra.mxu0 0
    %121 = vmatpush.bf16.xpose.msra.mxu0 %v108
    %122 = vmatmul.bf16.gmra.mxu0 %v106
    %v123 = vpop.f32.mrf.mxu0
    %v124 = vadd.f32 0.0, %v123
    %v125 = vpop.f32.mrf.mxu0
    %126 = vdwg.mxu0
    %127 = vmatpush.bf16.xpose.msra.mxu0 0
    %128 = vmatpush.bf16.xpose.msra.mxu0 0
    %129 = vmatpush.bf16.xpose.msra.mxu0 0
    %130 = vmatpush.bf16.xpose.msra.mxu0 0
    %131 = vmatpush.bf16.xpose.msra.mxu0 0
    %132 = vmatpush.bf16.xpose.msra.mxu0 0
    %133 = vmatpush.bf16.xpose.msra.mxu0 0
    %134 = vmatpush.bf16.xpose.msra.mxu0 %v109
    %135 = vmatmul.bf16.gmra.mxu0 %v107
    %v136 = vpop.f32.mrf.mxu0
    %v137 = vadd.f32 0.0, %v136
    %v138 = vpop.f32.mrf.mxu0
    %139 = vdwg.mxu0
    %v140 = vld [vmem:[#allocation8] sm:$0x3]
    %v141 = vld [vmem:[#allocation8 + $0x2] sm:$0x3]
    %v142 = vunpack.c.0.s8 %v140
    %v143 = vunpack.c.0.s8 %v141
    %v144 = vand.u32 %v142, 255
    %v145 = vand.u32 %v143, 255
    %v146 = vand.u32 %v144, 1
    %v147 = vand.u32 %v145, 1
    %v148 = vcvt.s32.f32 %v146
    %v149 = vcvt.s32.f32 %v147
    %v150 = vshra.s32 %v144, 1
    %v151 = vshra.s32 %v145, 1
    %v152 = vcvt.s32.f32 %v150
    %v153 = vcvt.s32.f32 %v151
    %v154 = vperm.slane %v112, 0
    %v155 = vperm.slane %v113, 0
    %v156 = vadd.f32 %v124, %v154
    %v157 = vadd.f32 %v137, %v155
    %vm158 = vcmask 64512
    %v159 = vsel %vm158, %v156, -inf
    %160 = vmax.xlane.f32.xlu0 %v159
    %v161 = vpop.xlane.xlu0 %160
    %v162 = vsel %vm158, %v157, -inf
    %163 = vmax.xlane.f32.xlu0 %v162
    %v164 = vpop.xlane.xlu0 %163
    %v165 = vsub.f32 %v156, %v161
    %v166 = vsub.f32 %v157, %v164
    %v167 = vmul.f32 %v165, 1.442695
    %v168 = vpow.pop %v167
    %v169 = vmul.f32 %v166, 1.442695
    %v170 = vpow.pop %v169
    %v171 = vsel %vm158, %v168, 0.0
    %172 = vadd.xlane.f32.xlu0 %v171
    %v173 = vpop.xlane.xlu0 %172
    %v174 = vsel %vm158, %v170, 0.0
    %175 = vadd.xlane.f32.xlu0 %v174
    %v176 = vpop.xlane.xlu0 %175
    %v177 = vrcp.pop %v173
    %v178 = vrcp.pop %v176
    %v179 = vmul.f32 %v168, %v177
    %v180 = vmul.f32 %v170, %v178
    %v181 = vmul.f32 %v179, %v148
    %v182 = vmul.f32 %v180, %v149
    %v183 = vperm.slane %v112, 1
    %v184 = vperm.slane %v113, 1
    %v185 = vadd.f32 %v124, %v183
    %v186 = vadd.f32 %v137, %v184
    %v187 = vsel %vm158, %v185, -inf
    %188 = vmax.xlane.f32.xlu0 %v187
    %v189 = vpop.xlane.xlu0 %188
    %v190 = vsel %vm158, %v186, -inf
    %191 = vmax.xlane.f32.xlu0 %v190
    %v192 = vpop.xlane.xlu0 %191
    %v193 = vsub.f32 %v185, %v189
    %v194 = vsub.f32 %v186, %v192
    %v195 = vmul.f32 %v193, 1.442695
    %v196 = vpow.pop %v195
    %v197 = vmul.f32 %v194, 1.442695
    %v198 = vpow.pop %v197
    %v199 = vsel %vm158, %v196, 0.0
    %200 = vadd.xlane.f32.xlu0 %v199
    %v201 = vpop.xlane.xlu0 %200
    %v202 = vsel %vm158, %v198, 0.0
    %203 = vadd.xlane.f32.xlu0 %v202
    %v204 = vpop.xlane.xlu0 %203
    %v205 = vrcp.pop %v201
    %v206 = vrcp.pop %v204
    %v207 = vmul.f32 %v196, %v205
    %v208 = vmul.f32 %v198, %v206
    %v209 = vmul.f32 %v207, %v152
    %v210 = vmul.f32 %v208, %v153
    %v211 = vadd.f32 %v181, %v209
    %v212 = vadd.f32 %v182, %v210
    %v213 = vpack.c.bf16 %v211, %v211
    %v214 = vpack.c.bf16 %v212, %v212
    %v216 = vsel %vm158, %v213, 0
    %vm218 = vcmask 1043456
    %v220 = vsel %vm218, %v110, 0
    %222 = vmatpush.bf16.msra.mxu0 0
    %223 = vmatpush.bf16.msra.mxu0 0
    %224 = vmatpush.bf16.msra.mxu0 0
    %225 = vmatpush.bf16.msra.mxu0 0
    %226 = vmatpush.bf16.msra.mxu0 0
    %227 = vmatpush.bf16.msra.mxu0 0
    %228 = vmatpush.bf16.msra.mxu0 0
    %229 = vmatpush.bf16.msra.mxu0 %v220
    %230 = vmatmul.bf16.gmra.mxu0 %v216
    %v231 = vpop.f32.mrf.mxu0
    %v232 = vadd.f32 0.0, %v231
    %v233 = vpop.f32.mrf.mxu0
    %234 = vdwg.mxu0
    %v236 = vsel %vm158, %v214, 0
    %v239 = vsel %vm218, %v111, 0
    %241 = vmatpush.bf16.msra.mxu0 0
    %242 = vmatpush.bf16.msra.mxu0 0
    %243 = vmatpush.bf16.msra.mxu0 0
    %244 = vmatpush.bf16.msra.mxu0 0
    %245 = vmatpush.bf16.msra.mxu0 0
    %246 = vmatpush.bf16.msra.mxu0 0
    %247 = vmatpush.bf16.msra.mxu0 0
    %248 = vmatpush.bf16.msra.mxu0 %v239
    %249 = vmatmul.bf16.gmra.mxu0 %v236
    %v250 = vpop.f32.mrf.mxu0
    %v251 = vadd.f32 0.0, %v250
    %v252 = vpop.f32.mrf.mxu0
    %253 = vdwg.mxu0
    %254 = vst [vmem:[#allocation11] sm:$0xff] %v232
    %255 = vst [vmem:[#allocation11 + $0x8] sm:$0xff] %v251
    // Predicated region
    $region42: #{tpu_custom_call.1} parent=1 // pred_check
      _
    $region43: #{tpu_custom_call.1} parent=1 // pred_check_branch
      %257 = sbr.rel (0) target = $region45
    $region44: #{tpu_custom_call.1} parent=1 // pred_region
      %259 = vsyncadd [#allocation4], 0
      %s260 = sshll.u32 [#allocation11], 4
      %s261 = int_to_ptr.vmem [resolvable:$true] %s260
      %s262 = sshll.u32 %s5, 4
      %s263 = int_to_ptr.hbm [resolvable:$true] %s262
      %268 = dma.vmem_to_hbm [thread:$0]  %s261, 256, %s263, [#allocation4], 128, 128, 8
    $region45: #{tpu_custom_call.1} parent=1 // pred_fallthru
      _
    // Predicated region
    $region46: #{tpu_custom_call.1} parent=1 // pred_check
      _
    $region47: #{tpu_custom_call.1} parent=1 // pred_check_branch
      %270 = sbr.rel (0) target = $region49
    $region48: #{tpu_custom_call.1} parent=1 // pred_region
      %272 = dma.done [#allocation4], 256
    $region49: #{tpu_custom_call.1} parent=1 // pred_fallthru
      _
    %273 = vsyncpa [#allocation3], 1
    %274 = vsyncpa [#allocation6], 1
    %275 = vsyncpa [#allocation9], 1
    %276 = vsyncpa [#allocation4], 1

</llo_original>
